<compile_context>
chip_gen: v7x
topology: tpu7x:2x2x1
jax: 0.10.0
libtpu: 0.0.40
codegen_flags: <defaults>
</compile_context>

<pallas_src>
import functools

import jax
import jax.numpy as jnp
from jax import lax
from jax.experimental import pallas as pl
from jax.experimental.pallas import tpu as pltpu


_MXU_DTYPE = jnp.bfloat16           # MXU operand dtype (accumulation stays f32)
_INTERMEDIATE_DTYPE = jnp.bfloat16  # q/k/v + attention-output storage between kernels

_vmem_limit_cache = None


def _vmem_limit():
    """Generation-aware VMEM budget: ~3/4 of physical (96 MiB v5e/v6e, 48 MiB v7x)."""
    global _vmem_limit_cache
    if _vmem_limit_cache is None:
        limit = 48 * 1024 * 1024
        try:
            cap = getattr(pltpu.get_tpu_info(), "vmem_capacity_bytes", None)
            if cap:
                limit = (int(cap) * 3) // 4
        except Exception:
            pass
        _vmem_limit_cache = limit
    return _vmem_limit_cache


def _round_up(x, m):
    return ((x + m - 1) // m) * m


def _choose_tile(dim, target, multiple):
    """Largest tile <= target that divides `dim` and is a multiple of `multiple`.
    Falls back to the full extent (always legal w.r.t. the (8,128) rule)."""
    if dim <= target:
        return dim
    t = (target // multiple) * multiple
    while t >= multiple:
        if dim % t == 0:
            return t
        t -= multiple
    return dim


# ------------------------- Tiled Linear: y = x @ w.T (+ b) [* scale] -------------------------
def _matmul_kernel(x_ref, w_ref, o_ref, acc_ref, *, out_scale):
    @pl.when(pl.program_id(2) == 0)
    def _():
        acc_ref[...] = jnp.zeros_like(acc_ref)

    # w in native PyTorch (D_out, D_in) layout -> contract last dims (no .T); bf16 MXU.
    acc_ref[...] += lax.dot_general(
        x_ref[...].astype(_MXU_DTYPE), w_ref[...].astype(_MXU_DTYPE),
        dimension_numbers=(((1,), (1,)), ((), ())),
        preferred_element_type=jnp.float32)

    @pl.when(pl.program_id(2) == pl.num_programs(2) - 1)
    def _():
        acc = acc_ref[...]
        if out_scale is not None:
            acc = acc * out_scale
        o_ref[...] = acc.astype(o_ref.dtype)


def _matmul_bias_kernel(x_ref, w_ref, b_ref, o_ref, acc_ref, *, out_scale):
    @pl.when(pl.program_id(2) == 0)
    def _():
        acc_ref[...] = jnp.zeros_like(acc_ref)

    acc_ref[...] += lax.dot_general(
        x_ref[...].astype(_MXU_DTYPE), w_ref[...].astype(_MXU_DTYPE),
        dimension_numbers=(((1,), (1,)), ((), ())),
        preferred_element_type=jnp.float32)

    @pl.when(pl.program_id(2) == pl.num_programs(2) - 1)
    def _():
        acc = acc_ref[...] + b_ref[...].astype(jnp.float32)
        if out_scale is not None:
            acc = acc * out_scale
        o_ref[...] = acc.astype(o_ref.dtype)


def linear(x, w, b=None, *, tm=512, tn=256, tk=512, out_dtype=None, out_scale=None):
    """PyTorch-style Linear. w kept in native (D_out, D_in) layout.
    out_scale (if given) is applied in the epilogue (used to fold the softmax scale)."""
    *lead, d_in = x.shape
    d_out = w.shape[0]
    out_dtype = out_dtype if out_dtype is not None else x.dtype

    x2 = x.reshape(-1, d_in)
    m = x2.shape[0]

    # Hardened shapes: pad M to a multiple of 8; pad large misaligned K/N to 128 so the
    # full-extent fallback can never blow past the VMEM budget.
    m_p = _round_up(m, 8)
    if m_p != m:
        x2 = jnp.pad(x2, ((0, m_p - m), (0, 0)))
    k_p = d_in
    if d_in % 128 and d_in > 512:
        k_p = _round_up(d_in, 128)
        x2 = jnp.pad(x2, ((0, 0), (0, k_p - d_in)))
        w = jnp.pad(w, ((0, 0), (0, k_p - d_in)))
    n_p = d_out
    if d_out % 128 and d_out > 512:
        n_p = _round_up(d_out, 128)
        w = jnp.pad(w, ((0, n_p - d_out), (0, 0)))
        if b is not None:
            b = jnp.pad(b, ((0, n_p - d_out),))

    tm = _choose_tile(m_p, tm, 8)      # sublane axis of x / out
    tn = _choose_tile(n_p, tn, 128)    # lane axis of out (sublane of w)
    tk = _choose_tile(k_p, tk, 128)    # contraction (lane axis of x and w)
    grid = (m_p // tm, n_p // tn, k_p // tk)

    x_spec = pl.BlockSpec((tm, tk), lambda i, j, k: (i, k))
    w_spec = pl.BlockSpec((tn, tk), lambda i, j, k: (j, k))
    o_spec = pl.BlockSpec((tm, tn), lambda i, j, k: (i, j))
    params = pltpu.CompilerParams(
        dimension_semantics=("parallel", "parallel", "arbitrary"),
        vmem_limit_bytes=_vmem_limit())
    scratch = [pltpu.VMEM((tm, tn), jnp.float32)]
    out_sds = jax.ShapeDtypeStruct((m_p, n_p), out_dtype)

    if b is None:
        out = pl.pallas_call(
            functools.partial(_matmul_kernel, out_scale=out_scale),
            out_shape=out_sds, grid=grid,
            in_specs=[x_spec, w_spec], out_specs=o_spec,
            scratch_shapes=scratch, compiler_params=params,
        )(x2, w)
    else:
        b2 = b.reshape(1, n_p)
        b_spec = pl.BlockSpec((1, tn), lambda i, j, k: (0, j))
        out = pl.pallas_call(
            functools.partial(_matmul_bias_kernel, out_scale=out_scale),
            out_shape=out_sds, grid=grid,
            in_specs=[x_spec, w_spec, b_spec], out_specs=o_spec,
            scratch_shapes=scratch, compiler_params=params,
        )(x2, w, b2)

    out = out[:m, :d_out]
    return out.reshape(*lead, d_out)


# ------------------------- Flash attention core (online softmax over Lk) -------------------------
def _flash_attn_kernel(q_ref, k_ref, v_ref, o_ref, m_sc, l_sc, acc_sc):
    ki = pl.program_id(3)

    @pl.when(ki == 0)
    def _():
        m_sc[...] = jnp.full(m_sc.shape, -jnp.inf, dtype=m_sc.dtype)
        l_sc[...] = jnp.zeros_like(l_sc)
        acc_sc[...] = jnp.zeros_like(acc_sc)

    q = q_ref[0].astype(_MXU_DTYPE)   # (Ht, Tq, Dkq)  softmax scale already folded into q
    k = k_ref[0].astype(_MXU_DTYPE)   # (Ht, Tk, Dkq)
    v = v_ref[0].astype(_MXU_DTYPE)   # (Ht, Tk, Dhv)

    # Per-head q @ k^T without materializing k.T (batched dot_general); f32 softmax math.
    s = lax.dot_general(q, k,
                        dimension_numbers=(((2,), (2,)), ((0,), (0,))),
                        preferred_element_type=jnp.float32)        # (Ht, Tq, Tk)

    m_prev = m_sc[...]
    m_new = jnp.maximum(m_prev, jnp.max(s, axis=-1, keepdims=True))
    alpha = jnp.exp(m_prev - m_new)
    p = jnp.exp(s - m_new)
    l_sc[...] = alpha * l_sc[...] + jnp.sum(p, axis=-1, keepdims=True)
    acc_sc[...] = alpha * acc_sc[...] + lax.dot_general(
        p.astype(_MXU_DTYPE), v,
        dimension_numbers=(((2,), (1,)), ((0,), (0,))),
        preferred_element_type=jnp.float32)                        # (Ht, Tq, Dhv)
    m_sc[...] = m_new

    @pl.when(ki == pl.num_programs(3) - 1)
    def _():
        # One dense store of the head-major block. approx reciprocal runs on the EUP;
        # ~1e-3 relative error, comfortably within the test tolerance.
        o_ref[0] = (acc_sc[...] * pl.reciprocal(l_sc[...], approx=True)).astype(o_ref.dtype)


def _choose_head_chunk(H, Tq, Tk, Dhv, budget_bytes=4 << 20):
    """Largest divisor of H whose per-step f32 score + accumulator footprint fits."""
    best = 1
    for ht in range(1, H + 1):
        if H % ht:
            continue
        if ht * Tq * (Tk + Dhv + 2) * 4 <= budget_bytes:
            best = ht
    return best


def attention_core(q, k, v, out_dtype):
    """q,k,v: (B, H, L, Dh). Returns (B, H, Lq, Dhv) head-major; the head-merge
    (torch transpose(1,2).reshape) is fused into the output projection's BlockSpecs."""
    B, H, Lq, Dkq = q.shape
    Lk = k.shape[2]
    Dhv = v.shape[-1]
    assert k.shape[2] == v.shape[2], "attention requires len_k == len_v"

    Tq = _choose_tile(Lq, 512, 8)
    Tk = _choose_tile(Lk, 512, 8)
    Ht = _choose_head_chunk(H, Tq, Tk, Dhv)
    grid = (B, H // Ht, Lq // Tq, Lk // Tk)

    return pl.pallas_call(
        _flash_attn_kernel,
        out_shape=jax.ShapeDtypeStruct((B, H, Lq, Dhv), out_dtype),
        grid=grid,
        in_specs=[
            pl.BlockSpec((1, Ht, Tq, Dkq), lambda b, h, i, j: (b, h, i, 0)),
            pl.BlockSpec((1, Ht, Tk, Dkq), lambda b, h, i, j: (b, h, j, 0)),
            pl.BlockSpec((1, Ht, Tk, Dhv), lambda b, h, i, j: (b, h, j, 0)),
        ],
        out_specs=pl.BlockSpec((1, Ht, Tq, Dhv), lambda b, h, i, j: (b, h, i, 0)),
        scratch_shapes=[
            pltpu.VMEM((Ht, Tq, 1), jnp.float32),    # running max
            pltpu.VMEM((Ht, Tq, 1), jnp.float32),    # running denominator
            pltpu.VMEM((Ht, Tq, Dhv), jnp.float32),  # running numerator
        ],
        compiler_params=pltpu.CompilerParams(
            dimension_semantics=("parallel", "parallel", "parallel", "arbitrary"),
            vmem_limit_bytes=_vmem_limit()),
    )(q, k, v)


# ------------------------- Output projection fused with the head merge -------------------------
def _proj_heads_kernel(x_ref, w_ref, b_ref, o_ref, acc_ref):
    @pl.when(pl.program_id(3) == 0)
    def _():
        acc_ref[...] = jnp.zeros_like(acc_ref)

    x = x_ref[0]                            # (Hc, tm, Dhv) head-major attention output
    hc = x.shape[0]
    partial = lax.dot_general(
        x[0].astype(_MXU_DTYPE), w_ref[0].astype(_MXU_DTYPE),
        dimension_numbers=(((1,), (1,)), ((), ())),
        preferred_element_type=jnp.float32)
    for h in range(1, hc):                  # static unroll; Hc*Dhv lanes contracted per step
        partial += lax.dot_general(
            x[h].astype(_MXU_DTYPE), w_ref[h].astype(_MXU_DTYPE),
            dimension_numbers=(((1,), (1,)), ((), ())),
            preferred_element_type=jnp.float32)
    acc_ref[...] += partial

    @pl.when(pl.program_id(3) == pl.num_programs(3) - 1)
    def _():
        o_ref[0] = (acc_ref[...] + b_ref[...].astype(jnp.float32)).astype(o_ref.dtype)


def proj_from_heads(a, w, b, out_dtype, *, tm=512, tn=256):
    """proj(x) where x = attn_out.transpose(1,2).reshape(B, Lq, H*Dhv).
    The transpose+merge is done by the BlockSpec index_map (DMA engine), so there is
    no in-kernel relayout and no wrapper HBM transpose of the activations."""
    B, H, Lq, Dhv = a.shape
    d_out, d_in = w.shape
    assert d_in == H * Dhv

    n_p = d_out
    if d_out % 128 and d_out > 512:
        n_p = _round_up(d_out, 128)
        w = jnp.pad(w, ((0, n_p - d_out), (0, 0)))
        b = jnp.pad(b, ((0, n_p - d_out),))

    # Static param transform (hoist to weight-load time in real use):
    # (D_out, H*Dhv) -> (H, D_out, Dhv) so each K grid step contracts a head chunk.
    w_heads = jnp.transpose(w.reshape(n_p, H, Dhv), (1, 0, 2))
    b2 = b.reshape(1, n_p)

    tm = _choose_tile(Lq, tm, 8)
    tn = _choose_tile(n_p, tn, 128)
    hc = 1
    for c in range(1, H + 1):
        if H % c == 0 and c * Dhv <= 512:
            hc = c
    grid = (B, Lq // tm, n_p // tn, H // hc)

    out = pl.pallas_call(
        _proj_heads_kernel,
        out_shape=jax.ShapeDtypeStruct((B, Lq, n_p), out_dtype),
        grid=grid,
        in_specs=[
            pl.BlockSpec((1, hc, tm, Dhv), lambda b_, i, j, k: (b_, k, i, 0)),
            pl.BlockSpec((hc, tn, Dhv), lambda b_, i, j, k: (k, j, 0)),
            pl.BlockSpec((1, tn), lambda b_, i, j, k: (0, j)),
        ],
        out_specs=pl.BlockSpec((1, tm, tn), lambda b_, i, j, k: (b_, i, j)),
        scratch_shapes=[pltpu.VMEM((tm, tn), jnp.float32)],
        compiler_params=pltpu.CompilerParams(
            dimension_semantics=("parallel", "parallel", "parallel", "arbitrary"),
            vmem_limit_bytes=_vmem_limit()),
    )(a, w_heads, b2)
    return out[:, :, :d_out]


# ------------------------- Full module forward -------------------------
def attention_forward(params, x_q, x_k, x_v, num_heads):
    dim_kq = params["w_qs"].shape[0]
    dim_v = params["w_vs"].shape[0]
    hd_kq = dim_kq // num_heads
    hd_v = dim_v // num_heads
    scale = hd_kq ** (-0.5)

    B, Lq, _ = x_q.shape
    Lk, Lv = x_k.shape[1], x_v.shape[1]

    # q/k/v projections (q_bias=k_bias=v_bias=False). Softmax scale folded into the
    # q-projection epilogue; intermediates emitted in bf16 to halve HBM traffic.
    # TODO(synk): for self-attention (x_q is x_k is x_v with dim_kq == dim_v) the three
    # projections could share one stacked-weight pallas_call so x is read from HBM once.
    q = linear(x_q, params["w_qs"], out_dtype=_INTERMEDIATE_DTYPE, out_scale=scale)
    k = linear(x_k, params["w_ks"], out_dtype=_INTERMEDIATE_DTYPE)
    v = linear(x_v, params["w_vs"], out_dtype=_INTERMEDIATE_DTYPE)

    # Reproduce torch's raw .view(B, H, L, Dh) exactly (row-major reinterpretation —
    # a free metadata reshape, NOT a split-heads transpose).
    q = q.reshape(B, num_heads, Lq, hd_kq)
    k = k.reshape(B, num_heads, Lk, hd_kq)
    v = v.reshape(B, num_heads, Lv, hd_v)

    # qk_norm=False -> identity norms; attn_drop=0 -> identity dropout.
    a = attention_core(q, k, v, out_dtype=_INTERMEDIATE_DTYPE)   # (B, H, Lq, hd_v)

    # Output projection (bias=True); the transpose(1,2).reshape head-merge is fused
    # into this kernel's BlockSpecs. proj_drop=0 -> identity.
    return proj_from_heads(a, params["proj_w"], params["proj_b"], out_dtype=x_q.dtype)


# ------------------------- Parameter init (deterministic) -------------------------
def init_params(key, dim_kq, dim_v):
    def uni(k, shape, fan_in):
        bound = 1.0 / (fan_in ** 0.5)
        return jax.random.uniform(k, shape, jnp.float32, -bound, bound)

    k1, k2, k3, k4, k5 = jax.random.split(key, 5)
    return {
        "w_qs": uni(k1, (dim_kq, dim_kq), dim_kq),
        "w_ks": uni(k2, (dim_kq, dim_kq), dim_kq),
        "w_vs": uni(k3, (dim_v, dim_v), dim_v),
        "proj_w": uni(k4, (dim_v, dim_v), dim_v),
        "proj_b": uni(k5, (dim_v,), dim_v),
    }


# ------------------------- Pure-JAX reference -------------------------
def reference_forward(params, x_q, x_k, x_v, num_heads):
    dim_kq = params["w_qs"].shape[0]
    dim_v = params["w_vs"].shape[0]
    hd_kq = dim_kq // num_heads
    hd_v = dim_v // num_heads
    scale = hd_kq ** (-0.5)
    B, Lq, _ = x_q.shape
    Lk, Lv = x_k.shape[1], x_v.shape[1]

    q = (x_q @ params["w_qs"].T).reshape(B, num_heads, Lq, hd_kq)
    k = (x_k @ params["w_ks"].T).reshape(B, num_heads, Lk, hd_kq)
    v = (x_v @ params["w_vs"].T).reshape(B, num_heads, Lv, hd_v)
    attn = jax.nn.softmax((q * scale) @ jnp.swapaxes(k, -2, -1), axis=-1)
    x = attn @ v
    x = jnp.transpose(x, (0, 2, 1, 3)).reshape(B, Lq, dim_v)
    return x @ params["proj_w"].T + params["proj_b"]


if __name__ == "__main__":
    B = 2
    len_q = 16
    len_k = 16   # len_v must equal len_k for attn @ v
    len_v = 16
    num_heads = 4
    dim_kq = 32
    dim_v = 32

    key = jax.random.PRNGKey(0)
    kp, kq, kk, kv = jax.random.split(key, 4)
    params = init_params(kp, dim_kq, dim_v)
    x_q = jax.random.normal(kq, (B, len_q, dim_kq), jnp.float32)
    x_k = jax.random.normal(kk, (B, len_k, dim_kq), jnp.float32)
    x_v = jax.random.normal(kv, (B, len_v, dim_v), jnp.float32)

    out = attention_forward(params, x_q, x_k, x_v, num_heads)
    out = jax.block_until_ready(out)

    ref = reference_forward(params, x_q, x_k, x_v, num_heads)
    assert out.shape == (B, len_q, dim_v)
    # bf16 MXU operands + approx reciprocal leave ~1e-2 worst-case deviation vs the
    # pure-f32 reference; 2e-2 tolerance passes comfortably at these shapes.
    assert jnp.allclose(out, ref, rtol=2e-2, atol=2e-2), "mismatch vs reference"

    print("KERNEL_OK")
</pallas_src>

<mosaic_0001>
module attributes {stable_mosaic.version = 11 : i64} {
  func.func @_matmul_kernel(%arg0: i32, %arg1: i32, %arg2: i32, %arg3: memref<32x32xf32, #tpu.memory_space<vmem>>, %arg4: memref<32x32xf32, #tpu.memory_space<vmem>>, %arg5: memref<32x32xbf16, #tpu.memory_space<vmem>>, %arg6: memref<32x32xf32, #tpu.memory_space<vmem>>) attributes {dimension_semantics = [#tpu.dimension_semantics<parallel>, #tpu.dimension_semantics<parallel>, #tpu.dimension_semantics<arbitrary>], iteration_bounds = array<i64: 1, 1, 1>, scalar_prefetch = 0 : i64, scratch_operands = 1 : i64, tpu.core_type = #tpu.core_type<tc>, window_params = [{transform_indices = @transform_0, window_bounds = array<i64: 32, 32>}, {transform_indices = @transform_1, window_bounds = array<i64: 32, 32>}, {transform_indices = @transform_2, window_bounds = array<i64: 32, 32>}]} {
    %c0_i32 = arith.constant 0 : i32
    %0 = arith.cmpi eq, %arg2, %c0_i32 : i32
    %1 = arith.extui %0 : i1 to i32
    %c0_i32_0 = arith.constant 0 : i32
    %2 = arith.cmpi ne, %1, %c0_i32_0 : i32
    scf.if %2 {
      %cst_10 = arith.constant 0.000000e+00 : f32
      %14 = vector.broadcast %cst_10 : f32 to vector<32x32xf32>
      %c0_11 = arith.constant 0 : index
      %c0_12 = arith.constant 0 : index
      %15 = vector.load %arg6[%c0_11, %c0_12] : memref<32x32xf32, #tpu.memory_space<vmem>>, vector<32x32xf32>
      tpu.vector_store %arg6[%c0_11, %c0_12], %14 {strides = array<i32>} : memref<32x32xf32, #tpu.memory_space<vmem>>, vector<32x32xf32>,
    } else {
    }
    %c0 = arith.constant 0 : index
    %c0_1 = arith.constant 0 : index
    %3 = vector.load %arg6[%c0, %c0_1] : memref<32x32xf32, #tpu.memory_space<vmem>>, vector<32x32xf32>
    %c0_2 = arith.constant 0 : index
    %c0_3 = arith.constant 0 : index
    %4 = vector.load %arg3[%c0_2, %c0_3] : memref<32x32xf32, #tpu.memory_space<vmem>>, vector<32x32xf32>
    %5 = arith.truncf %4 : vector<32x32xf32> to vector<32x32xbf16>
    %c0_4 = arith.constant 0 : index
    %c0_5 = arith.constant 0 : index
    %6 = vector.load %arg4[%c0_4, %c0_5] : memref<32x32xf32, #tpu.memory_space<vmem>>, vector<32x32xf32>
    %7 = arith.truncf %6 : vector<32x32xf32> to vector<32x32xbf16>
    %cst = arith.constant dense<0.000000e+00> : vector<32x32xf32>
    %8 = tpu.matmul %5, %7, %cst {dimension_numbers = #tpu.dot_dimension_numbers<[1], [1], [0], [0], [0, 0, 1, 0], [], []>} : vector<32x32xbf16>, vector<32x32xbf16>, vector<32x32xf32> -> vector<32x32xf32>
    %9 = arith.addf %3, %8 : vector<32x32xf32>
    %c0_6 = arith.constant 0 : index
    %c0_7 = arith.constant 0 : index
    %10 = vector.load %arg6[%c0_6, %c0_7] : memref<32x32xf32, #tpu.memory_space<vmem>>, vector<32x32xf32>
    tpu.vector_store %arg6[%c0_6, %c0_7], %9 {strides = array<i32>} : memref<32x32xf32, #tpu.memory_space<vmem>>, vector<32x32xf32>,
    %c0_i32_8 = arith.constant 0 : i32
    %11 = arith.cmpi eq, %arg2, %c0_i32_8 : i32
    %12 = arith.extui %11 : i1 to i32
    %c0_i32_9 = arith.constant 0 : i32
    %13 = arith.cmpi ne, %12, %c0_i32_9 : i32
    scf.if %13 {
      %c0_10 = arith.constant 0 : index
      %c0_11 = arith.constant 0 : index
      %14 = vector.load %arg6[%c0_10, %c0_11] : memref<32x32xf32, #tpu.memory_space<vmem>>, vector<32x32xf32>
      %cst_12 = arith.constant 0.353553385 : f32
      %15 = vector.broadcast %cst_12 : f32 to vector<32x32xf32>
      %16 = arith.mulf %14, %15 : vector<32x32xf32>
      %17 = arith.truncf %16 : vector<32x32xf32> to vector<32x32xbf16>
      %c0_13 = arith.constant 0 : index
      %c0_14 = arith.constant 0 : index
      %18 = vector.load %arg5[%c0_13, %c0_14] : memref<32x32xbf16, #tpu.memory_space<vmem>>, vector<32x32xbf16>
      tpu.vector_store %arg5[%c0_13, %c0_14], %17 {strides = array<i32>} : memref<32x32xbf16, #tpu.memory_space<vmem>>, vector<32x32xbf16>,
    } else {
    }
    return
  }
  func.func @transform_0(%arg0: i32, %arg1: i32, %arg2: i32) -> (i32, i32) {
    %c0_i32 = arith.constant 0 : i32
    return %arg0, %arg2 : i32, i32
  }
  func.func @transform_1(%arg0: i32, %arg1: i32, %arg2: i32) -> (i32, i32) {
    %c0_i32 = arith.constant 0 : i32
    return %arg1, %arg2 : i32, i32
  }
  func.func @transform_2(%arg0: i32, %arg1: i32, %arg2: i32) -> (i32, i32) {
    %c0_i32 = arith.constant 0 : i32
    return %arg0, %arg1 : i32, i32
  }
}

</mosaic_0001>

<llo_original>
// kernel: tpu_custom_call.1
$region0: #{tpu_custom_call.1}
  #allocation0 [shape = 'u32[]', space=smem, size = 0x4, offset = 0x4, fixed_abs, tag = 'smem constant byte address 0x4 - core index']
  #allocation1 [shape = 'u32[144,128]{1,0:T(1,128)}', space=vmem, size = 0x12000, scoped, tag = 'internal scratch']
  #allocation2 [shape = 'f32[32,32]{1,0:T(8,128)}', space=vmem, size = 0x4000, scoped, tag = 'scratch operand']
  %s0 = inlined_call_operand.hbm [shape: f32[32,32], index: 0, kind: input, shape index: {}]
  %s1 = inlined_call_operand.hbm [shape: f32[32,32], index: 1, kind: input, shape index: {}]
  %s2 = inlined_call_operand.hbm [shape: bf16[32,32], index: 2, kind: output, shape index: {}]
  %s3 = sld [smem:[#allocation0]]
  $region34: #{tpu_custom_call.1} parent=0
    _
  %s5 = ssub.s32 1, %s3
  %s6 = scalar_select 0, %s5, %s3
  $region1: #{tpu_custom_call.1} parent=0
    #allocation3 [shape = 'u8[16384]{0}', space=vmem, size = 0x4000, scoped, tag = 'input window, operand 0, single buffered']
    #allocation4 [shape = 's32[1]{0}', space=sflag, size = 0x4, scoped, tag = 'scoped memory for tpu_custom_call.1']
    #allocation5 [shape = 's32[1]{0}', space=sflag, size = 0x4, scoped, tag = 'scoped memory for tpu_custom_call.1']
    #allocation6 [shape = 'u8[16384]{0}', space=vmem, size = 0x4000, scoped, tag = 'input window, operand 1, single buffered']
    #allocation7 [shape = 's32[1]{0}', space=sflag, size = 0x4, scoped, tag = 'scoped memory for tpu_custom_call.1']
    #allocation8 [shape = 'u8[8192]{0}', space=vmem, size = 0x2000, scoped, tag = 'output window, operand 0, single buffered']
    %7 = vsyncpa [#allocation4], 0
    %8 = vsyncpa [#allocation7], 0
    %9 = vsyncpa [#allocation5], 0
    // Predicated region
    $region2: #{tpu_custom_call.1} parent=1 // pred_check
      _
    $region3: #{tpu_custom_call.1} parent=1 // pred_check_branch
      %11 = sbr.rel (0) target = $region5
    $region4: #{tpu_custom_call.1} parent=1 // pred_region
      %s13 = ssub.s32 512, 512
      %14 = vsyncadd [#allocation4], %s13
      %s15 = sshll.u32 [#allocation3], 4
      %s16 = int_to_ptr.vmem [resolvable:$true] %s15
      %21 = dma.hbm_to_vmem [thread:$0]  %s0, 512, %s16, [#allocation4], 128, 128, 8
    $region5: #{tpu_custom_call.1} parent=1 // pred_fallthru
      _
    // Predicated region
    $region6: #{tpu_custom_call.1} parent=1 // pred_check
      _
    $region7: #{tpu_custom_call.1} parent=1 // pred_check_branch
      %23 = sbr.rel (0) target = $region9
    $region8: #{tpu_custom_call.1} parent=1 // pred_region
      %s25 = ssub.s32 512, 512
      %26 = vsyncadd [#allocation7], %s25
      %s27 = sshll.u32 [#allocation6], 4
      %s28 = int_to_ptr.vmem [resolvable:$true] %s27
      %33 = dma.hbm_to_vmem [thread:$0]  %s1, 512, %s28, [#allocation7], 128, 128, 8
    $region9: #{tpu_custom_call.1} parent=1 // pred_fallthru
      _
    // Predicated region
    $region10: #{tpu_custom_call.1} parent=1 // pred_check
      _
    $region11: #{tpu_custom_call.1} parent=1 // pred_check_branch
      %35 = sbr.rel (0) target = $region13
    $region12: #{tpu_custom_call.1} parent=1 // pred_region
      %36 = dma.done [#allocation4], 512
    $region13: #{tpu_custom_call.1} parent=1 // pred_fallthru
      _
    // Predicated region
    $region14: #{tpu_custom_call.1} parent=1 // pred_check
      _
    $region15: #{tpu_custom_call.1} parent=1 // pred_check_branch
      %38 = sbr.rel (0) target = $region17
    $region16: #{tpu_custom_call.1} parent=1 // pred_region
      %39 = dma.done [#allocation7], 512
    $region17: #{tpu_custom_call.1} parent=1 // pred_fallthru
      _
    %p41 = scmp.eq.s32.totalorder 0, 0
    // Predicated region
    $region18: #{tpu_custom_call.1} parent=1 // pred_check
      %p42 = pneg %p41
    $region19: #{tpu_custom_call.1} parent=1 // pred_check_branch
      %44 = sbr.rel (%p42) target = $region21
    $region20: #{tpu_custom_call.1} parent=1 // pred_region
      %vm45 = vcmask 261120
      %46 = vst.msk [vmem:[#allocation2] sm:$0xff] %vm45, 0.0
      %47 = vst.msk [vmem:[#allocation2 + $0x8] sm:$0xff] %vm45, 0.0
      %48 = vst.msk [vmem:[#allocation2 + $0x10] sm:$0xff] %vm45, 0.0
      %49 = vst.msk [vmem:[#allocation2 + $0x18] sm:$0xff] %vm45, 0.0
    $region21: #{tpu_custom_call.1} parent=1 // pred_fallthru
      _
    %v50 = vld [vmem:[#allocation2] sm:$0xff]
    %v51 = vld [vmem:[#allocation2 + $0x8] sm:$0xff]
    %v52 = vld [vmem:[#allocation2 + $0x10] sm:$0xff]
    %v53 = vld [vmem:[#allocation2 + $0x18] sm:$0xff]
    %v54 = vld [vmem:[#allocation3] sm:$0xff]
    %v55 = vld [vmem:[#allocation3 + $0x8] sm:$0xff]
    %v56 = vld [vmem:[#allocation3 + $0x10] sm:$0xff]
    %v57 = vld [vmem:[#allocation3 + $0x18] sm:$0xff]
    %v58 = vpack.c.bf16 %v55, %v54
    %v59 = vpack.c.bf16 %v57, %v56
    %v60 = vld [vmem:[#allocation6] sm:$0xff]
    %v61 = vld [vmem:[#allocation6 + $0x8] sm:$0xff]
    %v62 = vld [vmem:[#allocation6 + $0x10] sm:$0xff]
    %v63 = vld [vmem:[#allocation6 + $0x18] sm:$0xff]
    %v64 = vpack.c.bf16 %v61, %v60
    %v65 = vpack.c.bf16 %v63, %v62
    %vm66 = vcmask 261120
    %v68 = vsel %vm66, %v58, 0
    %v71 = vsel %vm66, %v59, 0
    %v74 = vsel %vm66, %v64, 0
    %v77 = vsel %vm66, %v65, 0
    %79 = vmatprep.subr.bf16.mxu0 0
    %80 = vmatpush1.bf16.xpose.msra.mxu0 %v74
    %81 = vmatprep.subr.bf16.mxu0 0
    %82 = vmatpush1.bf16.xpose.msra.mxu0 %v77
    %83 = vmatprep.subr.bf16.mxu0 0
    %84 = vmatpush1.bf16.xpose.msra.mxu0 0
    %85 = vmatprep.subr.bf16.mxu0 0
    %86 = vmatpush1.bf16.xpose.msra.mxu0 0
    %87 = vmatprep.subr.bf16.mxu0 0
    %88 = vmatpush1.bf16.xpose.msra.mxu0 0
    %89 = vmatprep.subr.bf16.mxu0 0
    %90 = vmatpush1.bf16.xpose.msra.mxu0 0
    %91 = vmatprep.subr.bf16.mxu0 0
    %92 = vmatpush1.bf16.xpose.msra.mxu0 0
    %93 = vmatprep.subr.bf16.mxu0 0
    %94 = vmatpush1.bf16.xpose.msra.mxu0 0
    %95 = vmatprep.subr.bf16.mxu0 0
    %96 = vmatpush1.bf16.xpose.msra.mxu0 0
    %97 = vmatprep.subr.bf16.mxu0 0
    %98 = vmatpush1.bf16.xpose.msra.mxu0 0
    %99 = vmatprep.subr.bf16.mxu0 0
    %100 = vmatpush1.bf16.xpose.msra.mxu0 0
    %101 = vmatprep.subr.bf16.mxu0 0
    %102 = vmatpush1.bf16.xpose.msra.mxu0 0
    %103 = vmatprep.subr.bf16.mxu0 0
    %104 = vmatpush1.bf16.xpose.msra.mxu0 0
    %105 = vmatprep.subr.bf16.mxu0 0
    %106 = vmatpush1.bf16.xpose.msra.mxu0 0
    %107 = vmatprep.subr.bf16.mxu0 0
    %108 = vmatpush1.bf16.xpose.msra.mxu0 0
    %109 = vmatprep.subr.bf16.mxu0 0
    %110 = vmatpush1.bf16.xpose.msra.mxu0 0
    %111 = vmatprep.mubr.bf16.mxu0 0
    %112 = vmatmul.mubr.bf16.gmra.mrb[0].mxu0 %v68
    %v113 = vpop.f32.mrb[0].mxu0
    %v114 = vadd.f32 0.0, %v113
    %v115 = vpop.f32.mrb[0].mxu0
    %v116 = vpop.f32.mrb[0].mxu0
    %v117 = vadd.f32 0.0, %v116
    %v118 = vpop.f32.mrb[0].mxu0
    %119 = vmatprep.mubr.bf16.mxu0 0
    %120 = vmatmul.mubr.bf16.gmra.mrb[0].mxu0 %v71
    %v121 = vpop.f32.mrb[0].mxu0
    %v122 = vadd.f32 0.0, %v121
    %v123 = vpop.f32.mrb[0].mxu0
    %v124 = vpop.f32.mrb[0].mxu0
    %v125 = vadd.f32 0.0, %v124
    %v126 = vpop.f32.mrb[0].mxu0
    %127 = vdwg.mxu0
    %v128 = vadd.f32 %v50, %v114
    %v129 = vadd.f32 %v51, %v117
    %v130 = vadd.f32 %v52, %v122
    %v131 = vadd.f32 %v53, %v125
    %132 = vst.msk [vmem:[#allocation2] sm:$0xff] %vm66, %v128
    %133 = vst.msk [vmem:[#allocation2 + $0x8] sm:$0xff] %vm66, %v129
    %134 = vst.msk [vmem:[#allocation2 + $0x10] sm:$0xff] %vm66, %v130
    %135 = vst.msk [vmem:[#allocation2 + $0x18] sm:$0xff] %vm66, %v131
    // Predicated region
    $region22: #{tpu_custom_call.1} parent=1 // pred_check
      %p136 = pneg %p41
    $region23: #{tpu_custom_call.1} parent=1 // pred_check_branch
      %138 = sbr.rel (%p136) target = $region25
    $region24: #{tpu_custom_call.1} parent=1 // pred_region
      %v139 = vld [vmem:[#allocation2] sm:$0xff]
      %v140 = vld [vmem:[#allocation2 + $0x8] sm:$0xff]
      %v141 = vld [vmem:[#allocation2 + $0x10] sm:$0xff]
      %v142 = vld [vmem:[#allocation2 + $0x18] sm:$0xff]
      %v143 = vmul.f32 %v139, 0.35355338
      %v144 = vmul.f32 %v140, 0.35355338
      %v145 = vmul.f32 %v141, 0.35355338
      %v146 = vmul.f32 %v142, 0.35355338
      %v147 = vpack.c.bf16 %v144, %v143
      %v148 = vpack.c.bf16 %v146, %v145
      %v151 = vunpack.c.l.b16 %v147
      %v152 = vunpack.c.h.b16 %v147
      %v153 = vunpack.c.l.b16 %v148
      %v154 = vunpack.c.h.b16 %v148
      %v155 = vpack.c.b16 %v151, %v151
      %v156 = vpack.c.b16 %v152, %v152
      %v157 = vpack.c.b16 %v153, %v153
      %v158 = vpack.c.b16 %v154, %v154
      %vm163 = vcmask 257024
      %164 = vst.msk [vmem:[#allocation8] sm:$0xf] %vm163, %v155
      %165 = vst.msk [vmem:[#allocation8 + $0x4] sm:$0xf] %vm163, %v156
      %166 = vst.msk [vmem:[#allocation8 + $0x8] sm:$0xf] %vm163, %v157
      %167 = vst.msk [vmem:[#allocation8 + $0xc] sm:$0xf] %vm163, %v158
    $region25: #{tpu_custom_call.1} parent=1 // pred_fallthru
      _
    // Predicated region
    $region26: #{tpu_custom_call.1} parent=1 // pred_check
      _
    $region27: #{tpu_custom_call.1} parent=1 // pred_check_branch
      %169 = sbr.rel (0) target = $region29
    $region28: #{tpu_custom_call.1} parent=1 // pred_region
      %s171 = ssub.s32 256, 256
      %172 = vsyncadd [#allocation5], %s171
      %s173 = sshll.u32 [#allocation8], 4
      %s174 = int_to_ptr.vmem [resolvable:$true] %s173
      %179 = dma.vmem_to_hbm [thread:$0]  %s174, 256, %s2, [#allocation5], 64, 64, 4
    $region29: #{tpu_custom_call.1} parent=1 // pred_fallthru
      _
    // Predicated region
    $region30: #{tpu_custom_call.1} parent=1 // pred_check
      _
    $region31: #{tpu_custom_call.1} parent=1 // pred_check_branch
      %181 = sbr.rel (0) target = $region33
    $region32: #{tpu_custom_call.1} parent=1 // pred_region
      %182 = dma.done [#allocation5], 256
    $region33: #{tpu_custom_call.1} parent=1 // pred_fallthru
      _
    %183 = vsyncpa [#allocation4], 1
    %184 = vsyncpa [#allocation7], 1
    %185 = vsyncpa [#allocation5], 1

</llo_original>
